<compile_context>
chip_gen: v6e
topology: v6e:2x2x1
jax: 0.10.0
libtpu: 0.0.40
codegen_flags: <defaults>
</compile_context>

<pallas_src>
import functools

import jax
import jax.numpy as jnp
from jax.experimental import pallas as pl
from jax.experimental.pallas import tpu as pltpu


def _encoder_kernel(x_ref, w1t_ref, b1t_ref, w2t_ref, b2t_ref, z_ref):
    # x_ref  : (bt, input_dim)        f32
    # w1t_ref: (hidden, input_dim)    f32   (= W1^T, resident)
    # b1t_ref: (hidden, 1)            f32   (resident)
    # w2t_ref: (2*z_dim, hidden)      f32   (= W2^T, resident)
    # b2t_ref: (2*z_dim, 1)           f32   (resident)
    # z_ref  : (2*z_dim, bt)          f32   (lane-dense output)
    x = x_ref[...]

    # ---- Layer 1 on the MXU, transposed form: hT = W1^T @ x^T -> (hidden, bt)
    # Contraction on x's minor dim ("q @ k.T" pattern) keeps batch on the lane
    # axis without materializing a transpose of x.
    hT = jax.lax.dot_general(
        w1t_ref[...], x,
        dimension_numbers=(((1,), (1,)), ((), ())),
        preferred_element_type=jnp.float32)
    hT = jnp.maximum(hT + b1t_ref[...], 0.0)      # bias + ReLU on dense vregs

    # ---- Layer 2 on the MXU: zT = W2^T @ hT -> (2*z_dim, bt), N = bt dense.
    zT = jnp.dot(w2t_ref[...], hT, preferred_element_type=jnp.float32)
    zT = zT + b2t_ref[...]

    # ---- Two static sublane-sliced, lane-dense stores; exp only on logvar.
    zd = z_ref.shape[0] // 2
    z_ref[0:zd, :] = zT[0:zd, :]                  # mu rows
    z_ref[zd:, :] = jnp.exp(zT[zd:, :])           # exp(logvar) rows (EUP)


def encoder_forward(x, w1, b1, w2, b2, z_dim, *, batch_tile=4096):
    """x: [B, input_dim] f32. Returns (mu [B, z_dim], var [B, z_dim])."""
    B, input_dim = x.shape
    hidden_dim = w1.shape[1]
    out2 = w2.shape[1]
    assert out2 == 2 * z_dim

    def _round_up(a, m):
        return ((a + m - 1) // m) * m

    # Batch sits on the lane axis of the output, so tiles are 128-aligned.
    # Tiny batches: one whole tile (pure launch-overhead regime).
    # Large batches: keep >=2 grid steps so v7x (2 TCs) can shard the grid.
    b128 = _round_up(B, 128)
    if b128 <= 256:
        bt = b128
    else:
        bt = min(_round_up(batch_tile, 128), _round_up((b128 + 1) // 2, 128))
    b_pad = _round_up(B, bt)
    x_p = x if b_pad == B else jnp.pad(x, ((0, b_pad - B), (0, 0)))

    # Transposed weight / column-bias layouts (tiny one-time XLA reshapes) so
    # the kernel's batch axis stays lane-dense end to end.
    w1t = w1.T                              # (hidden, input_dim)
    b1c = b1.reshape(hidden_dim, 1)
    w2t = w2.T                              # (2*z_dim, hidden)
    b2c = b2.reshape(out2, 1)

    zT = pl.pallas_call(
        _encoder_kernel,
        out_shape=jax.ShapeDtypeStruct((out2, b_pad), jnp.float32),
        grid=(b_pad // bt,),
        in_specs=[
            pl.BlockSpec((bt, input_dim), lambda i: (i, 0)),           # x tile
            pl.BlockSpec((hidden_dim, input_dim), lambda i: (0, 0)),   # W1^T (resident)
            pl.BlockSpec((hidden_dim, 1), lambda i: (0, 0)),           # b1   (resident)
            pl.BlockSpec((out2, hidden_dim), lambda i: (0, 0)),        # W2^T (resident)
            pl.BlockSpec((out2, 1), lambda i: (0, 0)),                 # b2   (resident)
        ],
        out_specs=pl.BlockSpec((out2, bt), lambda i: (0, i)),          # lane-dense
        compiler_params=pltpu.CompilerParams(
            dimension_semantics=("parallel",),
            vmem_limit_bytes=32 * 1024 * 1024,   # safe on v7x (64 MiB physical)
        ),
    )(x_p, w1t, b1c, w2t, b2c)

    # exp() already applied to the logvar rows inside the kernel.
    mu = zT[:z_dim, :B].T
    var = zT[z_dim:, :B].T
    return mu, var


def init_params(key, input_dim, hidden_dim, z_dim):
    """Deterministic synthetic init (stands in for the module's initialize_weights)."""
    k1, k2, k3, k4 = jax.random.split(key, 4)
    w1 = jax.random.normal(k1, (input_dim, hidden_dim), jnp.float32) * 0.02
    b1 = jax.random.normal(k2, (hidden_dim,), jnp.float32) * 0.02
    w2 = jax.random.normal(k3, (hidden_dim, 2 * z_dim), jnp.float32) * 0.02
    b2 = jax.random.normal(k4, (2 * z_dim,), jnp.float32) * 0.02
    return w1, b1, w2, b2


def reference_forward(x, w1, b1, w2, b2, z_dim):
    h = jnp.maximum(x @ w1 + b1, 0.0)
    z = h @ w2 + b2
    return z[:, :z_dim], jnp.exp(z[:, z_dim:])


if __name__ == "__main__":
    # Module defaults: input_dim=2, output_dim(z_dim)=2, hidden_dim=64.
    input_dim, z_dim, hidden_dim = 2, 2, 64

    key = jax.random.PRNGKey(0)
    kx, kp, kx2 = jax.random.split(key, 3)
    w1, b1, w2, b2 = init_params(kp, input_dim, hidden_dim, z_dim)

    fwd = jax.jit(functools.partial(encoder_forward, z_dim=z_dim))

    # Tolerances: MXU matmuls use default (reduced) f32 precision inside the
    # kernel and in the XLA reference; values here are O(1e-2), errors O(1e-5).
    atol = rtol = 2e-4

    # 1) Small batch (grid of 1, whole-tile path).
    batch = 8
    x = jax.random.normal(kx, (batch, input_dim), jnp.float32)
    mu, var = fwd(x, w1, b1, w2, b2)
    jax.block_until_ready((mu, var))
    mu_ref, var_ref = reference_forward(x, w1, b1, w2, b2, z_dim)
    assert mu.shape == (batch, z_dim) and var.shape == (batch, z_dim)
    assert jnp.allclose(mu, mu_ref, atol=atol, rtol=rtol)
    assert jnp.allclose(var, var_ref, atol=atol, rtol=rtol)

    # 2) Larger, non-aligned batch (multi-tile path with padding; >=2 grid steps).
    batch2 = 300
    x2 = jax.random.normal(kx2, (batch2, input_dim), jnp.float32)
    mu2, var2 = fwd(x2, w1, b1, w2, b2)
    jax.block_until_ready((mu2, var2))
    mu2_ref, var2_ref = reference_forward(x2, w1, b1, w2, b2, z_dim)
    assert mu2.shape == (batch2, z_dim) and var2.shape == (batch2, z_dim)
    assert jnp.allclose(mu2, mu2_ref, atol=atol, rtol=rtol)
    assert jnp.allclose(var2, var2_ref, atol=atol, rtol=rtol)

    print("KERNEL_OK")
</pallas_src>

<mosaic_0001>
module attributes {stable_mosaic.version = 11 : i64} {
  func.func @_encoder_kernel(%arg0: i32, %arg1: memref<128x2xf32, #tpu.memory_space<vmem>>, %arg2: memref<64x2xf32, #tpu.memory_space<vmem>>, %arg3: memref<64x1xf32, #tpu.memory_space<vmem>>, %arg4: memref<4x64xf32, #tpu.memory_space<vmem>>, %arg5: memref<4x1xf32, #tpu.memory_space<vmem>>, %arg6: memref<4x128xf32, #tpu.memory_space<vmem>>) attributes {dimension_semantics = [#tpu.dimension_semantics<parallel>], iteration_bounds = array<i64: 1>, scalar_prefetch = 0 : i64, scratch_operands = 0 : i64, tpu.core_type = #tpu.core_type<tc>, window_params = [{transform_indices = @transform_0, window_bounds = array<i64: 128, 2>}, {pipeline_mode = #tpu.pipeline_mode<synchronous>, transform_indices = @transform_1, window_bounds = array<i64: 64, 2>}, {pipeline_mode = #tpu.pipeline_mode<synchronous>, transform_indices = @transform_2, window_bounds = array<i64: 64, 1>}, {pipeline_mode = #tpu.pipeline_mode<synchronous>, transform_indices = @transform_3, window_bounds = array<i64: 4, 64>}, {pipeline_mode = #tpu.pipeline_mode<synchronous>, transform_indices = @transform_4, window_bounds = array<i64: 4, 1>}, {transform_indices = @transform_5, window_bounds = array<i64: 4, 128>}]} {
    %c0 = arith.constant 0 : index
    %c0_0 = arith.constant 0 : index
    %0 = vector.load %arg1[%c0, %c0_0] : memref<128x2xf32, #tpu.memory_space<vmem>>, vector<128x2xf32>
    %c0_1 = arith.constant 0 : index
    %c0_2 = arith.constant 0 : index
    %1 = vector.load %arg2[%c0_1, %c0_2] : memref<64x2xf32, #tpu.memory_space<vmem>>, vector<64x2xf32>
    %cst = arith.constant dense<0.000000e+00> : vector<64x128xf32>
    %2 = tpu.matmul %1, %0, %cst {dimension_numbers = #tpu.dot_dimension_numbers<[1], [1], [0], [0], [0, 0, 1, 0], [], []>} : vector<64x2xf32>, vector<128x2xf32>, vector<64x128xf32> -> vector<64x128xf32>
    %c0_3 = arith.constant 0 : index
    %c0_4 = arith.constant 0 : index
    %3 = vector.load %arg3[%c0_3, %c0_4] : memref<64x1xf32, #tpu.memory_space<vmem>>, vector<64x1xf32>
    %4 = vector.broadcast %3 : vector<64x1xf32> to vector<64x128xf32>
    %5 = arith.addf %2, %4 : vector<64x128xf32>
    %cst_5 = arith.constant 0.000000e+00 : f32
    %6 = vector.broadcast %cst_5 : f32 to vector<64x128xf32>
    %7 = arith.maximumf %5, %6 : vector<64x128xf32>
    %c0_6 = arith.constant 0 : index
    %c0_7 = arith.constant 0 : index
    %8 = vector.load %arg4[%c0_6, %c0_7] : memref<4x64xf32, #tpu.memory_space<vmem>>, vector<4x64xf32>
    %cst_8 = arith.constant dense<0.000000e+00> : vector<4x128xf32>
    %9 = tpu.matmul %8, %7, %cst_8 {dimension_numbers = #tpu.dot_dimension_numbers<[1], [0], [0], [1], [0, 0, 1, 1], [], []>} : vector<4x64xf32>, vector<64x128xf32>, vector<4x128xf32> -> vector<4x128xf32>
    %c0_9 = arith.constant 0 : index
    %c0_10 = arith.constant 0 : index
    %10 = vector.load %arg5[%c0_9, %c0_10] : memref<4x1xf32, #tpu.memory_space<vmem>>, vector<4x1xf32>
    %11 = vector.broadcast %10 : vector<4x1xf32> to vector<4x128xf32>
    %12 = arith.addf %9, %11 : vector<4x128xf32>
    %13 = vector.extract_strided_slice %12 {offsets = [0, 0], sizes = [2, 128], strides = [1, 1]} : vector<4x128xf32> to vector<2x128xf32>
    %c0_11 = arith.constant 0 : index
    %c0_12 = arith.constant 0 : index
    %14 = vector.load %arg6[%c0_11, %c0_12] : memref<4x128xf32, #tpu.memory_space<vmem>>, vector<2x128xf32>
    tpu.vector_store %arg6[%c0_11, %c0_12], %13 {strides = array<i32>} : memref<4x128xf32, #tpu.memory_space<vmem>>, vector<2x128xf32>,
    %15 = vector.extract_strided_slice %12 {offsets = [2, 0], sizes = [2, 128], strides = [1, 1]} : vector<4x128xf32> to vector<2x128xf32>
    %16 = math.exp %15 : vector<2x128xf32>
    %c2 = arith.constant 2 : index
    %c0_13 = arith.constant 0 : index
    %17 = vector.load %arg6[%c2, %c0_13] : memref<4x128xf32, #tpu.memory_space<vmem>>, vector<2x128xf32>
    tpu.vector_store %arg6[%c2, %c0_13], %16 {strides = array<i32>} : memref<4x128xf32, #tpu.memory_space<vmem>>, vector<2x128xf32>,
    return
  }
  func.func @transform_0(%arg0: i32) -> (i32, i32) {
    %c0_i32 = arith.constant 0 : i32
    %c0_i32_0 = arith.constant 0 : i32
    return %arg0, %c0_i32 : i32, i32
  }
  func.func @transform_1(%arg0: i32) -> (i32, i32) {
    %c0_i32 = arith.constant 0 : i32
    %c0_i32_0 = arith.constant 0 : i32
    %c0_i32_1 = arith.constant 0 : i32
    return %c0_i32, %c0_i32_0 : i32, i32
  }
  func.func @transform_2(%arg0: i32) -> (i32, i32) {
    %c0_i32 = arith.constant 0 : i32
    %c0_i32_0 = arith.constant 0 : i32
    %c0_i32_1 = arith.constant 0 : i32
    return %c0_i32, %c0_i32_0 : i32, i32
  }
  func.func @transform_3(%arg0: i32) -> (i32, i32) {
    %c0_i32 = arith.constant 0 : i32
    %c0_i32_0 = arith.constant 0 : i32
    %c0_i32_1 = arith.constant 0 : i32
    return %c0_i32, %c0_i32_0 : i32, i32
  }
  func.func @transform_4(%arg0: i32) -> (i32, i32) {
    %c0_i32 = arith.constant 0 : i32
    %c0_i32_0 = arith.constant 0 : i32
    %c0_i32_1 = arith.constant 0 : i32
    return %c0_i32, %c0_i32_0 : i32, i32
  }
  func.func @transform_5(%arg0: i32) -> (i32, i32) {
    %c0_i32 = arith.constant 0 : i32
    %c0_i32_0 = arith.constant 0 : i32
    return %c0_i32, %arg0 : i32, i32
  }
}

</mosaic_0001>

<llo_original>
// kernel: encoder_forward.1
$region0: #{encoder_forward.1}
  #allocation0 [shape = 'u32[]', space=smem, size = 0x4, offset = 0x4, fixed_abs, tag = 'smem constant byte address 0x4 - core index']
  #allocation1 [shape = 'u32[144,128]{1,0:T(1,128)}', space=vmem, size = 0x12000, scoped, tag = 'internal scratch']
  %s0 = inlined_call_operand.vmem [shape: f32[128,2], index: 0, kind: input, shape index: {}]
  %s1 = inlined_call_operand.vmem [shape: f32[64,2], index: 1, kind: input, shape index: {}]
  %s2 = inlined_call_operand.vmem [shape: f32[64,1], index: 2, kind: input, shape index: {}]
  %s3 = inlined_call_operand.vmem [shape: f32[4,64], index: 3, kind: input, shape index: {}]
  %s4 = inlined_call_operand.vmem [shape: f32[4,1], index: 4, kind: input, shape index: {}]
  %s5 = inlined_call_operand.vmem [shape: f32[4,128], index: 5, kind: output, shape index: {}]
  %s6 = sld [smem:[#allocation0]]
  $region30: #{encoder_forward.1} parent=0
    _
  %s8 = ssub.s32 1, %s6
  %s9 = scalar_select 0, %s8, %s6
  // Predicated region
  $region2: #{encoder_forward.1} parent=0 // pred_check
    _
  $region3: #{encoder_forward.1} parent=0 // pred_check_branch
    %11 = sbr.rel (0) target = $region5
  $region4: #{encoder_forward.1} parent=0 // pred_region
    _
  $region5: #{encoder_forward.1} parent=0 // pred_fallthru
    _
  // Predicated region
  $region6: #{encoder_forward.1} parent=0 // pred_check
    _
  $region7: #{encoder_forward.1} parent=0 // pred_check_branch
    %13 = sbr.rel (0) target = $region9
  $region8: #{encoder_forward.1} parent=0 // pred_region
    _
  $region9: #{encoder_forward.1} parent=0 // pred_fallthru
    _
  // Predicated region
  $region10: #{encoder_forward.1} parent=0 // pred_check
    _
  $region11: #{encoder_forward.1} parent=0 // pred_check_branch
    %15 = sbr.rel (0) target = $region13
  $region12: #{encoder_forward.1} parent=0 // pred_region
    _
  $region13: #{encoder_forward.1} parent=0 // pred_fallthru
    _
  // Predicated region
  $region14: #{encoder_forward.1} parent=0 // pred_check
    _
  $region15: #{encoder_forward.1} parent=0 // pred_check_branch
    %17 = sbr.rel (0) target = $region17
  $region16: #{encoder_forward.1} parent=0 // pred_region
    _
  $region17: #{encoder_forward.1} parent=0 // pred_fallthru
    _
  // Predicated region
  $region18: #{encoder_forward.1} parent=0 // pred_check
    _
  $region19: #{encoder_forward.1} parent=0 // pred_check_branch
    %19 = sbr.rel (0) target = $region21
  $region20: #{encoder_forward.1} parent=0 // pred_region
    _
  $region21: #{encoder_forward.1} parent=0 // pred_fallthru
    _
  %v20 = vld [vmem:[%s0] sm:$0xff]
  %v21 = vld [vmem:[%s0 + $0x8] sm:$0xff]
  %v22 = vld [vmem:[%s0 + $0x10] sm:$0xff]
  %v23 = vld [vmem:[%s0 + $0x18] sm:$0xff]
  %v24 = vld [vmem:[%s0 + $0x20] sm:$0xff]
  %v25 = vld [vmem:[%s0 + $0x28] sm:$0xff]
  %v26 = vld [vmem:[%s0 + $0x30] sm:$0xff]
  %v27 = vld [vmem:[%s0 + $0x38] sm:$0xff]
  %v28 = vld [vmem:[%s0 + $0x40] sm:$0xff]
  %v29 = vld [vmem:[%s0 + $0x48] sm:$0xff]
  %v30 = vld [vmem:[%s0 + $0x50] sm:$0xff]
  %v31 = vld [vmem:[%s0 + $0x58] sm:$0xff]
  %v32 = vld [vmem:[%s0 + $0x60] sm:$0xff]
  %v33 = vld [vmem:[%s0 + $0x68] sm:$0xff]
  %v34 = vld [vmem:[%s0 + $0x70] sm:$0xff]
  %v35 = vld [vmem:[%s0 + $0x78] sm:$0xff]
  %v36 = vld [vmem:[%s1] sm:$0xff]
  %v37 = vld [vmem:[%s1 + $0x8] sm:$0xff]
  %v38 = vld [vmem:[%s1 + $0x10] sm:$0xff]
  %v39 = vld [vmem:[%s1 + $0x18] sm:$0xff]
  %v40 = vld [vmem:[%s1 + $0x20] sm:$0xff]
  %v41 = vld [vmem:[%s1 + $0x28] sm:$0xff]
  %v42 = vld [vmem:[%s1 + $0x30] sm:$0xff]
  %v43 = vld [vmem:[%s1 + $0x38] sm:$0xff]
  %v44 = vld [vmem:[%s2] sm:$0xff]
  %v45 = vld [vmem:[%s2 + $0x8] sm:$0xff]
  %v46 = vld [vmem:[%s2 + $0x10] sm:$0xff]
  %v47 = vld [vmem:[%s2 + $0x18] sm:$0xff]
  %v48 = vld [vmem:[%s2 + $0x20] sm:$0xff]
  %v49 = vld [vmem:[%s2 + $0x28] sm:$0xff]
  %v50 = vld [vmem:[%s2 + $0x30] sm:$0xff]
  %v51 = vld [vmem:[%s2 + $0x38] sm:$0xff]
  %53 = vset.pattern.permute.xlu0 0
  %54 = vperm.xlu0 %53, %v44
  %v55 = vpop.permute.xlu0 %54
  %58 = vset.pattern.permute.xlu0 0
  %59 = vperm.xlu0 %58, %v45
  %v60 = vpop.permute.xlu0 %59
  %63 = vset.pattern.permute.xlu0 0
  %64 = vperm.xlu0 %63, %v46
  %v65 = vpop.permute.xlu0 %64
  %68 = vset.pattern.permute.xlu0 0
  %69 = vperm.xlu0 %68, %v47
  %v70 = vpop.permute.xlu0 %69
  %73 = vset.pattern.permute.xlu0 0
  %74 = vperm.xlu0 %73, %v48
  %v75 = vpop.permute.xlu0 %74
  %78 = vset.pattern.permute.xlu0 0
  %79 = vperm.xlu0 %78, %v49
  %v80 = vpop.permute.xlu0 %79
  %83 = vset.pattern.permute.xlu0 0
  %84 = vperm.xlu0 %83, %v50
  %v85 = vpop.permute.xlu0 %84
  %88 = vset.pattern.permute.xlu0 0
  %89 = vperm.xlu0 %88, %v51
  %v90 = vpop.permute.xlu0 %89
  %vm92 = vcmask 15360
  %v94 = vsel %vm92, %v36, 0
  %v97 = vsel %vm92, %v37, 0
  %v100 = vsel %vm92, %v38, 0
  %v103 = vsel %vm92, %v39, 0
  %v106 = vsel %vm92, %v40, 0
  %v109 = vsel %vm92, %v41, 0
  %v112 = vsel %vm92, %v42, 0
  %v115 = vsel %vm92, %v43, 0
  %v118 = vsel %vm92, %v20, 0
  %v121 = vsel %vm92, %v21, 0
  %v124 = vsel %vm92, %v22, 0
  %v127 = vsel %vm92, %v23, 0
  %v130 = vsel %vm92, %v24, 0
  %v133 = vsel %vm92, %v25, 0
  %v136 = vsel %vm92, %v26, 0
  %v139 = vsel %vm92, %v27, 0
  %v142 = vsel %vm92, %v28, 0
  %v145 = vsel %vm92, %v29, 0
  %v148 = vsel %vm92, %v30, 0
  %v151 = vsel %vm92, %v31, 0
  %v154 = vsel %vm92, %v32, 0
  %v157 = vsel %vm92, %v33, 0
  %v160 = vsel %vm92, %v34, 0
  %v163 = vsel %vm92, %v35, 0
  %165 = vmatprep.subr.mxu0 0.0
  %166 = vmatpush1.xpose.msra.mxu0 %v163
  %167 = vmatprep.subr.mxu0 0.0
  %168 = vmatpush1.xpose.msra.mxu0 %v160
  %169 = vmatprep.subr.mxu0 0.0
  %170 = vmatpush1.xpose.msra.mxu0 %v157
  %171 = vmatprep.subr.mxu0 0.0
  %172 = vmatpush1.xpose.msra.mxu0 %v154
  %173 = vmatprep.subr.mxu0 0.0
  %174 = vmatpush1.xpose.msra.mxu0 %v151
  %175 = vmatprep.subr.mxu0 0.0
  %176 = vmatpush1.xpose.msra.mxu0 %v148
  %177 = vmatprep.subr.mxu0 0.0
  %178 = vmatpush1.xpose.msra.mxu0 %v145
  %179 = vmatprep.subr.mxu0 0.0
  %180 = vmatpush1.xpose.msra.mxu0 %v142
  %181 = vmatprep.subr.mxu0 0.0
  %182 = vmatpush1.xpose.msra.mxu0 %v139
  %183 = vmatprep.subr.mxu0 0.0
  %184 = vmatpush1.xpose.msra.mxu0 %v136
  %185 = vmatprep.subr.mxu0 0.0
  %186 = vmatpush1.xpose.msra.mxu0 %v133
  %187 = vmatprep.subr.mxu0 0.0
  %188 = vmatpush1.xpose.msra.mxu0 %v130
  %189 = vmatprep.subr.mxu0 0.0
  %190 = vmatpush1.xpose.msra.mxu0 %v127
  %191 = vmatprep.subr.mxu0 0.0
  %192 = vmatpush1.xpose.msra.mxu0 %v124
  %193 = vmatprep.subr.mxu0 0.0
  %194 = vmatpush1.xpose.msra.mxu0 %v121
  %195 = vmatprep.subr.mxu0 0.0
  %196 = vmatpush1.xpose.msra.mxu0 %v118
  %197 = vmatprep.subr.mxu0 0.0
  %198 = vmatpush2.xpose.msra.mxu0 0.0
  %199 = vmatprep.subr.mxu0 0.0
  %200 = vmatpush2.xpose.msra.mxu0 0.0
  %201 = vmatprep.subr.mxu0 0.0
  %202 = vmatpush2.xpose.msra.mxu0 0.0
  %203 = vmatprep.subr.mxu0 0.0
  %204 = vmatpush2.xpose.msra.mxu0 0.0
  %205 = vmatprep.subr.mxu0 0.0
  %206 = vmatpush2.xpose.msra.mxu0 0.0
  %207 = vmatprep.subr.mxu0 0.0
  %208 = vmatpush2.xpose.msra.mxu0 0.0
  %209 = vmatprep.subr.mxu0 0.0
  %210 = vmatpush2.xpose.msra.mxu0 0.0
  %211 = vmatprep.subr.mxu0 0.0
  %212 = vmatpush2.xpose.msra.mxu0 0.0
  %213 = vmatprep.subr.mxu0 0.0
  %214 = vmatpush2.xpose.msra.mxu0 0.0
  %215 = vmatprep.subr.mxu0 0.0
  %216 = vmatpush2.xpose.msra.mxu0 0.0
  %217 = vmatprep.subr.mxu0 0.0
  %218 = vmatpush2.xpose.msra.mxu0 0.0
  %219 = vmatprep.subr.mxu0 0.0
  %220 = vmatpush2.xpose.msra.mxu0 0.0
  %221 = vmatprep.subr.mxu0 0.0
  %222 = vmatpush2.xpose.msra.mxu0 0.0
  %223 = vmatprep.subr.mxu0 0.0
  %224 = vmatpush2.xpose.msra.mxu0 0.0
  %225 = vmatprep.subr.mxu0 0.0
  %226 = vmatpush2.xpose.msra.mxu0 0.0
  %227 = vmatprep.subr.mxu0 0.0
  %228 = vmatpush2.xpose.msra.mxu0 0.0
  %229 = vmatprep.mubr.f32.mxu0 0.0
  %230 = vmatmul.mubr.f32.gmra.mxu0 %v94
  %v231 = vpop.f32.mrf.mxu0
  %v232 = vadd.f32 %v55, %v231
  %v233 = vpop.f32.mrf.mxu0
  %234 = vmatprep.mubr.f32.mxu0 0.0
  %235 = vmatmul.mubr.f32.gmra.mxu0 %v97
  %v236 = vpop.f32.mrf.mxu0
  %v237 = vadd.f32 %v60, %v236
  %v238 = vpop.f32.mrf.mxu0
  %239 = vmatprep.mubr.f32.mxu0 0.0
  %240 = vmatmul.mubr.f32.gmra.mxu0 %v100
  %v241 = vpop.f32.mrf.mxu0
  %v242 = vadd.f32 %v65, %v241
  %v243 = vpop.f32.mrf.mxu0
  %244 = vmatprep.mubr.f32.mxu0 0.0
  %245 = vmatmul.mubr.f32.gmra.mxu0 %v103
  %v246 = vpop.f32.mrf.mxu0
  %v247 = vadd.f32 %v70, %v246
  %v248 = vpop.f32.mrf.mxu0
  %249 = vmatprep.mubr.f32.mxu0 0.0
  %250 = vmatmul.mubr.f32.gmra.mxu0 %v106
  %v251 = vpop.f32.mrf.mxu0
  %v252 = vadd.f32 %v75, %v251
  %v253 = vpop.f32.mrf.mxu0
  %254 = vmatprep.mubr.f32.mxu0 0.0
  %255 = vmatmul.mubr.f32.gmra.mxu0 %v109
  %v256 = vpop.f32.mrf.mxu0
  %v257 = vadd.f32 %v80, %v256
  %v258 = vpop.f32.mrf.mxu0
  %259 = vmatprep.mubr.f32.mxu0 0.0
  %260 = vmatmul.mubr.f32.gmra.mxu0 %v112
  %v261 = vpop.f32.mrf.mxu0
  %v262 = vadd.f32 %v85, %v261
  %v263 = vpop.f32.mrf.mxu0
  %264 = vmatprep.mubr.f32.mxu0 0.0
  %265 = vmatmul.mubr.f32.gmra.mxu0 %v115
  %v266 = vpop.f32.mrf.mxu0
  %v267 = vadd.f32 %v90, %v266
  %v268 = vpop.f32.mrf.mxu0
  %269 = vdwg.mxu0
  %v270 = vmax.f32 %v232, 0.0
  %v271 = vmax.f32 %v237, 0.0
  %v272 = vmax.f32 %v242, 0.0
  %v273 = vmax.f32 %v247, 0.0
  %v274 = vmax.f32 %v252, 0.0
  %v275 = vmax.f32 %v257, 0.0
  %v276 = vmax.f32 %v262, 0.0
  %v277 = vmax.f32 %v267, 0.0
  %v278 = vld [vmem:[%s3] sm:$0xf]
  %v279 = vld [vmem:[%s4] sm:$0xf]
  %281 = vset.pattern.permute.xlu0 0
  %282 = vperm.xlu0 %281, %v279
  %v283 = vpop.permute.xlu0 %282
  %vm285 = vcmask 523264
  %v287 = vsel %vm285, %v278, 0
  %289 = vmatprep.subr.mxu0 0.0
  %290 = vmatpush1.msra.mxu0 0.0
  %291 = vmatprep.subr.mxu0 0.0
  %292 = vmatpush1.msra.mxu0 0.0
  %293 = vmatprep.subr.mxu0 0.0
  %294 = vmatpush1.msra.mxu0 0.0
  %295 = vmatprep.subr.mxu0 0.0
  %296 = vmatpush1.msra.mxu0 0.0
  %297 = vmatprep.subr.mxu0 0.0
  %298 = vmatpush1.msra.mxu0 0.0
  %299 = vmatprep.subr.mxu0 0.0
  %300 = vmatpush1.msra.mxu0 0.0
  %301 = vmatprep.subr.mxu0 0.0
  %302 = vmatpush1.msra.mxu0 0.0
  %303 = vmatprep.subr.mxu0 0.0
  %304 = vmatpush1.msra.mxu0 0.0
  %305 = vmatprep.subr.mxu0 0.0
  %306 = vmatpush1.msra.mxu0 %v277
  %307 = vmatprep.subr.mxu0 0.0
  %308 = vmatpush1.msra.mxu0 %v276
  %309 = vmatprep.subr.mxu0 0.0
  %310 = vmatpush1.msra.mxu0 %v275
  %311 = vmatprep.subr.mxu0 0.0
  %312 = vmatpush1.msra.mxu0 %v274
  %313 = vmatprep.subr.mxu0 0.0
  %314 = vmatpush1.msra.mxu0 %v273
  %315 = vmatprep.subr.mxu0 0.0
  %316 = vmatpush1.msra.mxu0 %v272
  %317 = vmatprep.subr.mxu0 0.0
  %318 = vmatpush1.msra.mxu0 %v271
  %319 = vmatprep.subr.mxu0 0.0
  %320 = vmatpush1.msra.mxu0 %v270
  %321 = vmatprep.subr.mxu0 0.0
  %322 = vmatpush2.msra.mxu0 0.0
  %323 = vmatprep.subr.mxu0 0.0
  %324 = vmatpush2.msra.mxu0 0.0
  %325 = vmatprep.subr.mxu0 0.0
  %326 = vmatpush2.msra.mxu0 0.0
  %327 = vmatprep.subr.mxu0 0.0
  %328 = vmatpush2.msra.mxu0 0.0
  %329 = vmatprep.subr.mxu0 0.0
  %330 = vmatpush2.msra.mxu0 0.0
  %331 = vmatprep.subr.mxu0 0.0
  %332 = vmatpush2.msra.mxu0 0.0
  %333 = vmatprep.subr.mxu0 0.0
  %334 = vmatpush2.msra.mxu0 0.0
  %335 = vmatprep.subr.mxu0 0.0
  %336 = vmatpush2.msra.mxu0 0.0
  %337 = vmatprep.subr.mxu0 0.0
  %338 = vmatpush2.msra.mxu0 0.0
  %339 = vmatprep.subr.mxu0 0.0
  %340 = vmatpush2.msra.mxu0 0.0
  %341 = vmatprep.subr.mxu0 0.0
  %342 = vmatpush2.msra.mxu0 0.0
  %343 = vmatprep.subr.mxu0 0.0
  %344 = vmatpush2.msra.mxu0 0.0
  %345 = vmatprep.subr.mxu0 0.0
  %346 = vmatpush2.msra.mxu0 0.0
  %347 = vmatprep.subr.mxu0 0.0
  %348 = vmatpush2.msra.mxu0 0.0
  %349 = vmatprep.subr.mxu0 0.0
  %350 = vmatpush2.msra.mxu0 0.0
  %351 = vmatprep.subr.mxu0 0.0
  %352 = vmatpush2.msra.mxu0 0.0
  %353 = vmatprep.mubr.f32.mxu0 0.0
  %354 = vmatmul.mubr.f32.gmra.mxu0 %v287
  %v355 = vpop.f32.mrf.mxu0
  %v356 = vadd.f32 %v283, %v355
  %v357 = vpop.f32.mrf.mxu0
  %358 = vdwg.mxu0
  %359 = vst [vmem:[%s5] sm:$0x3] %v356
  %v360 = vmul.f32 %v356, 1.442695
  %v361 = vpow.pop %v360
  %362 = vst [vmem:[%s5] sm:$0xc] %v361
  // Predicated region
  $region22: #{encoder_forward.1} parent=0 // pred_check
    _
  $region23: #{encoder_forward.1} parent=0 // pred_check_branch
    %364 = sbr.rel (0) target = $region25
  $region24: #{encoder_forward.1} parent=0 // pred_region
    _
  $region25: #{encoder_forward.1} parent=0 // pred_fallthru
    _
  // Predicated region
  $region26: #{encoder_forward.1} parent=0 // pred_check
    _
  $region27: #{encoder_forward.1} parent=0 // pred_check_branch
    %366 = sbr.rel (0) target = $region29
  $region28: #{encoder_forward.1} parent=0 // pred_region
    _
  $region29: #{encoder_forward.1} parent=0 // pred_fallthru
    _

</llo_original>
